<compile_context>
chip_gen: v5e
topology: v5e:2x2
jax: 0.10.0
libtpu: 0.0.40
codegen_flags: <defaults>
</compile_context>

<pallas_src>
import math
import functools

import jax
import jax.numpy as jnp
from jax import lax
from jax.experimental import pallas as pl
from jax.experimental.pallas import tpu as pltpu  # noqa: F401  (TPU backend assumed)

F32 = jnp.float32
BF16 = jnp.bfloat16


# ----------------------------------------------------------------------------- helpers
def _full_spec(shape):
    nd = len(shape)
    return pl.BlockSpec(shape, lambda _nd=nd: (0,) * _nd)


def _pcall(kernel, out_shape, *inputs):
    """Single-invocation pallas_call: grid=() (no pipelining / no double buffering);
    every operand is one full VMEM block. vmem_limit_bytes left at compiler default
    (ample at these shapes; size from pltpu.get_tpu_info() at production scale)."""
    return pl.pallas_call(
        kernel,
        out_shape=out_shape,
        in_specs=[_full_spec(tuple(x.shape)) for x in inputs],
        out_specs=_full_spec(tuple(out_shape.shape)),
    )(*inputs)


def _dot(a, b):
    """bf16 operands, f32 MXU accumulation."""
    return jnp.dot(a.astype(BF16), b.astype(BF16), preferred_element_type=F32)


# ----------------------------------------------------------------------------- kernels
def explainer_kernel(*refs, n_layers):
    """Explainer_MLP (n_layers x Lin+ReLU, final Lin->1) fused with per-graph softmax.

    Output is lane-dense: a (1, N) row of node importances.  The softmax uses only
    VPU masking + lane/sublane reductions (no f32 MXU matmuls) and exact division."""
    x_ref = refs[0]
    wb = refs[1:1 + 2 * n_layers]
    wf_ref = refs[1 + 2 * n_layers]
    bf_ref = refs[2 + 2 * n_layers]
    p_ref = refs[3 + 2 * n_layers]        # (B, N) one-hot graph membership (bf16, exact)
    o_ref = refs[4 + 2 * n_layers]        # (1, N) node importance row

    h = x_ref[...]
    for l in range(n_layers):
        h = jnp.maximum(_dot(h, wb[2 * l][...]) + wb[2 * l + 1][...], 0.0)
    s = _dot(h, wf_ref[...]) + bf_ref[...]                  # (N, 1) node scores, f32

    member = p_ref[...] > 0.5                               # (B, N) bool
    srow = s.T                                              # (1, N)
    masked = jnp.where(member, srow, jnp.float32(-1e30))    # (B, N), f32 mask constant
    maxg = jnp.max(masked, axis=1, keepdims=True)           # (B, 1)   lane reduce
    e = jnp.where(member, jnp.exp(masked - maxg), 0.0)      # (B, N)
    denom = jnp.maximum(jnp.sum(e, axis=1, keepdims=True), 1e-30)   # (B, 1); >=1 if non-empty
    # each node belongs to exactly one graph -> sublane sum collapses to its softmax value
    o_ref[...] = jnp.sum(e / denom, axis=0, keepdims=True)  # (1, N)


def _fused_proj_head(pools, w1_ref, b1_ref, w2_ref, b2_ref, hidden):
    """Projection head on the 'concat' readout without materializing the concat:
       concat(pools) @ W1  ==  sum_l pools[l] @ W1[l*hid:(l+1)*hid]."""
    w1 = w1_ref[...]
    acc = None
    for l, pooled in enumerate(pools):
        part = _dot(pooled, w1[l * hidden:(l + 1) * hidden, :])
        acc = part if acc is None else acc + part
    z = jnp.maximum(acc + b1_ref[...], 0.0)
    return _dot(z, w2_ref[...]) + b2_ref[...]


def gin_encoder_kernel(*refs, n_layers, hidden):
    """All GIN layers + importance-weighted add-pools + projection head in one call.

    Each layer: relu( MLP( (A+I) @ h ) ),  MLP = Lin -> ReLU -> Lin   (GINConv, eps=0).
    The pool operator P_imp already carries the node importance weights."""
    a_ref, x_ref, pimp_ref = refs[0], refs[1], refs[2]
    wb = refs[3:3 + 4 * n_layers]
    pw1_ref, pb1_ref, pw2_ref, pb2_ref = refs[3 + 4 * n_layers:7 + 4 * n_layers]
    o_ref = refs[7 + 4 * n_layers]        # (B, emb) projected graph embeddings

    a_bf = a_ref[...]                     # (N, N) bf16 (A + I, 0/1/2 entries exact)
    pimp_bf = pimp_ref[...]               # (B, N) bf16 importance-folded add-pool
    h_bf = x_ref[...].astype(BF16)

    pools = []
    for l in range(n_layers):
        w1, b1 = wb[4 * l][...], wb[4 * l + 1][...]
        w2, b2 = wb[4 * l + 2][...], wb[4 * l + 3][...]
        agg = jnp.dot(a_bf, h_bf, preferred_element_type=F32)          # (N, d)
        t = jnp.maximum(_dot(agg, w1) + b1, 0.0)
        h_f = jnp.maximum(_dot(t, w2) + b2, 0.0)                       # f32 epilogue
        h_bf = h_f.astype(BF16)                                        # single cast / layer
        pools.append(jnp.dot(pimp_bf, h_bf, preferred_element_type=F32))   # (B, hidden)

    o_ref[...] = _fused_proj_head(pools, pw1_ref, pb1_ref, pw2_ref, pb2_ref, hidden)


def hyper_encoder_kernel(*refs, n_layers, hidden):
    """HypergraphConv layers on the dual hypergraph + weighted pools + projection head:
       relu( d_inv * (H @ (b_inv * (H^T @ (X @ Theta)))) + b )
    The (E,E) propagation matrix is never materialized, and H^T is never stored:
    H^T @ X is a transposed-LHS matmul (dot_general contracting over H's leading axis)."""
    h_ref, dinv_ref, binv_ref, ea_ref, peimp_ref = refs[:5]
    wb = refs[5:5 + 2 * n_layers]
    pw1_ref, pb1_ref, pw2_ref, pb2_ref = refs[5 + 2 * n_layers:9 + 2 * n_layers]
    o_ref = refs[9 + 2 * n_layers]        # (B, emb)

    H_bf = h_ref[...]                     # (E, N) bf16 incidence (0/1/2 exact)
    d_inv = dinv_ref[...]                 # (E, 1) hyper-node degree^-1 (f32)
    b_inv = binv_ref[...]                 # (N, 1) hyperedge degree^-1 (f32)
    peimp_bf = peimp_ref[...]             # (B, E) bf16 importance-folded edge add-pool
    xh_bf = ea_ref[...].astype(BF16)      # (E, Din_edge) dual-hypergraph node features

    pools = []
    for l in range(n_layers):
        theta, bias = wb[2 * l][...], wb[2 * l + 1][...]
        xt = _dot(xh_bf, theta)                                                # (E, d)
        tmp = lax.dot_general(H_bf, xt.astype(BF16),
                              dimension_numbers=(((0,), (0,)), ((), ())),
                              preferred_element_type=F32) * b_inv              # (N, d) = H^T@xt
        agg = jnp.dot(H_bf, tmp.astype(BF16), preferred_element_type=F32) * d_inv   # (E, d)
        xh_f = jnp.maximum(agg + bias, 0.0)
        xh_bf = xh_f.astype(BF16)
        pools.append(jnp.dot(peimp_bf, xh_bf, preferred_element_type=F32))     # (B, hidden)

    o_ref[...] = _fused_proj_head(pools, pw1_ref, pb1_ref, pw2_ref, pb2_ref, hidden)


# --------------------------------------------------------------------------- parameters
def xavier_uniform(key, fan_in, fan_out):
    bound = math.sqrt(6.0 / (fan_in + fan_out))
    return jax.random.uniform(key, (fan_in, fan_out), minval=-bound, maxval=bound, dtype=F32)


def init_params(key, input_dim, input_dim_edge, hidden_dim, encoder_layers,
                expl_hidden, expl_layers):
    keys = iter(jax.random.split(key, 64))
    p = {}

    # Explainer_MLP: expl_layers x (Linear + ReLU) then final Linear(hidden -> 1)
    expl = []
    d = input_dim
    for _ in range(expl_layers):
        expl.append((xavier_uniform(next(keys), d, expl_hidden),
                     jnp.zeros((1, expl_hidden), F32)))
        d = expl_hidden
    p["expl"] = expl
    p["expl_final"] = (xavier_uniform(next(keys), expl_hidden, 1), jnp.zeros((1, 1), F32))

    # GIN encoder: encoder_layers x GINConv(MLP = Lin-ReLU-Lin)
    gin = []
    d = input_dim
    for _ in range(encoder_layers):
        gin.append((xavier_uniform(next(keys), d, hidden_dim), jnp.zeros((1, hidden_dim), F32),
                    xavier_uniform(next(keys), hidden_dim, hidden_dim),
                    jnp.zeros((1, hidden_dim), F32)))
        d = hidden_dim
    p["gin"] = gin

    # HyperGNN encoder: encoder_layers x HypergraphConv
    hyp = []
    d = input_dim_edge
    for _ in range(encoder_layers):
        hyp.append((xavier_uniform(next(keys), d, hidden_dim), jnp.zeros((1, hidden_dim), F32)))
        d = hidden_dim
    p["hyper"] = hyp

    # projection heads (embedding_dim = hidden_dim * encoder_layers for 'concat' readout)
    # TODO(synk): production configs should pad hidden/emb to a multiple of 128 lanes.
    emb = hidden_dim * encoder_layers
    p["proj"] = (xavier_uniform(next(keys), emb, emb), jnp.zeros((1, emb), F32),
                 xavier_uniform(next(keys), emb, emb), jnp.zeros((1, emb), F32))
    p["proj_hyper"] = (xavier_uniform(next(keys), emb, emb), jnp.zeros((1, emb), F32),
                       xavier_uniform(next(keys), emb, emb), jnp.zeros((1, emb), F32))
    return p


# ------------------------------------------------------------------------------ forward
def signet_forward(params, x, edge_index, edge_attr, batch, num_graphs):
    N = x.shape[0]
    E = edge_index.shape[1]
    src, dst = edge_index[0], edge_index[1]
    B = num_graphs

    n_expl = len(params["expl"])
    n_enc = len(params["gin"])
    hidden = params["gin"][0][2].shape[1]
    emb = hidden * n_enc
    sds = jax.ShapeDtypeStruct

    # ---- structural operators (one-time XLA glue; bf16, 0/1/2 entries exact) ----
    # TODO(synk): for large graphs replace this dense glue and the O(E) gathers below
    # with scalar-prefetched index tables + DMA gathers inside N-tiled Pallas kernels.
    A_hat = (jnp.zeros((N, N), F32).at[dst, src].add(1.0)
             + jnp.eye(N, dtype=F32)).astype(BF16)                 # (N,N) GIN (A + I)
    P = jax.nn.one_hot(batch, B, dtype=F32).T                       # (B,N) node membership
    P_edge = jax.nn.one_hot(batch[src], B, dtype=F32).T             # (B,E) edge membership
    # dual hypergraph: hyper-nodes = edges (feat = edge_attr), hyperedges = original nodes
    H = jax.nn.one_hot(src, N, dtype=F32) + jax.nn.one_hot(dst, N, dtype=F32)   # (E,N)
    d_inv = (1.0 / jnp.maximum(jnp.sum(H, axis=1), 1e-12)).reshape(E, 1)
    hdeg = jnp.sum(H, axis=0)
    b_inv = jnp.where(hdeg > 0, 1.0 / jnp.maximum(hdeg, 1e-12), 0.0).reshape(N, 1)
    H_bf = H.astype(BF16)

    # ---- (1) explainer MLP + per-graph softmax -> lane-dense (1,N) importance row ----
    expl_flat = [t for lw in params["expl"] for t in lw]
    wf, bf = params["expl_final"]
    node_imp_row = _pcall(functools.partial(explainer_kernel, n_layers=n_expl),
                          sds((1, N), F32),
                          x, *expl_flat, wf, bf, P.astype(BF16))
    node_imp = node_imp_row.reshape(N, 1)                           # module-facing (N,1)

    # ---- (2) lift node importance to edge importance: O(E) gather (XLA glue) ----
    edge_imp_row = node_imp_row[0, src] * node_imp_row[0, dst]      # (E,)
    edge_imp = edge_imp_row.reshape(E, 1)

    # importance folded into the pool operators once (single bf16 cast, reused per layer)
    P_imp = (P * node_imp_row).astype(BF16)                         # (B,N)
    P_edge_imp = (P_edge * edge_imp_row[None, :]).astype(BF16)      # (B,E)

    # ---- (3) GIN layers + weighted pools + projection head, fully fused ----
    gin_flat = [t for lw in params["gin"] for t in lw]
    pw1, pb1, pw2, pb2 = params["proj"]
    y = _pcall(functools.partial(gin_encoder_kernel, n_layers=n_enc, hidden=hidden),
               sds((B, emb), F32),
               A_hat, x, P_imp, *gin_flat, pw1, pb1, pw2, pb2)

    # ---- (4) HyperGNN layers + weighted pools + projection head, fully fused ----
    hyp_flat = [t for lw in params["hyper"] for t in lw]
    hw1, hb1, hw2, hb2 = params["proj_hyper"]
    y_hyper = _pcall(functools.partial(hyper_encoder_kernel, n_layers=n_enc, hidden=hidden),
                     sds((B, emb), F32),
                     H_bf, d_inv, b_inv, edge_attr, P_edge_imp, *hyp_flat, hw1, hb1, hw2, hb2)

    return y, y_hyper, node_imp, edge_imp


# --------------------------------------------------------------------------------- main
if __name__ == "__main__":
    # small synthetic config consistent with the module's __init__
    input_dim = 8
    input_dim_edge = 4
    hidden_dim = 32          # args.hidden_dim
    encoder_layers = 2       # args.encoder_layers  (readout='concat' -> embedding_dim=64)
    expl_hidden = 16         # args.explainer_hidden_dim
    expl_layers = 2          # args.explainer_layers (explainer_model='mlp')

    # graph data: 2 graphs x 8 nodes, each graph a bidirectional ring (16 directed edges)
    B = 2
    nodes_per_graph = 8
    N = B * nodes_per_graph

    src_list, dst_list = [], []
    for g in range(B):
        off = g * nodes_per_graph
        for i in range(nodes_per_graph):
            a, b = off + i, off + (i + 1) % nodes_per_graph
            src_list += [a, b]
            dst_list += [b, a]
    edge_index = jnp.array([src_list, dst_list], dtype=jnp.int32)   # (2, E)
    E = edge_index.shape[1]
    batch = jnp.array(sum([[g] * nodes_per_graph for g in range(B)], []), dtype=jnp.int32)

    key = jax.random.PRNGKey(0)
    k_x, k_e, k_p = jax.random.split(key, 3)
    x = jax.random.normal(k_x, (N, input_dim), dtype=F32)
    edge_attr = jax.random.normal(k_e, (E, input_dim_edge), dtype=F32)

    params = init_params(k_p, input_dim, input_dim_edge, hidden_dim, encoder_layers,
                         expl_hidden, expl_layers)

    y, y_hyper, node_imp, edge_imp = signet_forward(params, x, edge_index, edge_attr, batch, B)
    jax.block_until_ready((y, y_hyper, node_imp, edge_imp))

    emb = hidden_dim * encoder_layers
    assert y.shape == (B, emb) and y_hyper.shape == (B, emb)
    assert node_imp.shape == (N, 1) and edge_imp.shape == (E, 1)
    # TODO(synk): exact torch_geometric HypergraphConv attention/edge-weight options and the
    # unused original node features `x` inside HyperGNN are not reproduced (defaults assumed).
    print("KERNEL_OK")
</pallas_src>

<mosaic_0001>
module attributes {stable_mosaic.version = 11 : i64} {
  func.func @explainer_kernel(%arg0: memref<16x8xf32, #tpu.memory_space<vmem>>, %arg1: memref<8x16xf32, #tpu.memory_space<vmem>>, %arg2: memref<1x16xf32, #tpu.memory_space<vmem>>, %arg3: memref<16x16xf32, #tpu.memory_space<vmem>>, %arg4: memref<1x16xf32, #tpu.memory_space<vmem>>, %arg5: memref<16x1xf32, #tpu.memory_space<vmem>>, %arg6: memref<1x1xf32, #tpu.memory_space<vmem>>, %arg7: memref<2x16xbf16, #tpu.memory_space<vmem>>, %arg8: memref<1x16xf32, #tpu.memory_space<vmem>>) attributes {dimension_semantics = [], scalar_prefetch = 0 : i64, scratch_operands = 0 : i64, tpu.core_type = #tpu.core_type<tc>} {
    %c0 = arith.constant 0 : index
    %c0_0 = arith.constant 0 : index
    %0 = vector.load %arg0[%c0, %c0_0] : memref<16x8xf32, #tpu.memory_space<vmem>>, vector<16x8xf32>
    %c0_1 = arith.constant 0 : index
    %c0_2 = arith.constant 0 : index
    %1 = vector.load %arg1[%c0_1, %c0_2] : memref<8x16xf32, #tpu.memory_space<vmem>>, vector<8x16xf32>
    %2 = arith.truncf %0 : vector<16x8xf32> to vector<16x8xbf16>
    %3 = arith.truncf %1 : vector<8x16xf32> to vector<8x16xbf16>
    %cst = arith.constant dense<0.000000e+00> : vector<16x16xf32>
    %4 = tpu.matmul %2, %3, %cst {dimension_numbers = #tpu.dot_dimension_numbers<[1], [0], [0], [1], [0, 0, 1, 1], [], []>} : vector<16x8xbf16>, vector<8x16xbf16>, vector<16x16xf32> -> vector<16x16xf32>
    %c0_3 = arith.constant 0 : index
    %c0_4 = arith.constant 0 : index
    %5 = vector.load %arg2[%c0_3, %c0_4] : memref<1x16xf32, #tpu.memory_space<vmem>>, vector<1x16xf32>
    %6 = vector.broadcast %5 : vector<1x16xf32> to vector<16x16xf32>
    %7 = arith.addf %4, %6 : vector<16x16xf32>
    %cst_5 = arith.constant 0.000000e+00 : f32
    %8 = vector.broadcast %cst_5 : f32 to vector<16x16xf32>
    %9 = arith.maximumf %7, %8 : vector<16x16xf32>
    %c0_6 = arith.constant 0 : index
    %c0_7 = arith.constant 0 : index
    %10 = vector.load %arg3[%c0_6, %c0_7] : memref<16x16xf32, #tpu.memory_space<vmem>>, vector<16x16xf32>
    %11 = arith.truncf %9 : vector<16x16xf32> to vector<16x16xbf16>
    %12 = arith.truncf %10 : vector<16x16xf32> to vector<16x16xbf16>
    %cst_8 = arith.constant dense<0.000000e+00> : vector<16x16xf32>
    %13 = tpu.matmul %11, %12, %cst_8 {dimension_numbers = #tpu.dot_dimension_numbers<[1], [0], [0], [1], [0, 0, 1, 1], [], []>} : vector<16x16xbf16>, vector<16x16xbf16>, vector<16x16xf32> -> vector<16x16xf32>
    %c0_9 = arith.constant 0 : index
    %c0_10 = arith.constant 0 : index
    %14 = vector.load %arg4[%c0_9, %c0_10] : memref<1x16xf32, #tpu.memory_space<vmem>>, vector<1x16xf32>
    %15 = vector.broadcast %14 : vector<1x16xf32> to vector<16x16xf32>
    %16 = arith.addf %13, %15 : vector<16x16xf32>
    %cst_11 = arith.constant 0.000000e+00 : f32
    %17 = vector.broadcast %cst_11 : f32 to vector<16x16xf32>
    %18 = arith.maximumf %16, %17 : vector<16x16xf32>
    %c0_12 = arith.constant 0 : index
    %c0_13 = arith.constant 0 : index
    %19 = vector.load %arg5[%c0_12, %c0_13] : memref<16x1xf32, #tpu.memory_space<vmem>>, vector<16x1xf32>
    %20 = arith.truncf %18 : vector<16x16xf32> to vector<16x16xbf16>
    %21 = arith.truncf %19 : vector<16x1xf32> to vector<16x1xbf16>
    %cst_14 = arith.constant dense<0.000000e+00> : vector<16x1xf32>
    %22 = tpu.matmul %20, %21, %cst_14 {dimension_numbers = #tpu.dot_dimension_numbers<[1], [0], [0], [1], [0, 0, 1, 1], [], []>} : vector<16x16xbf16>, vector<16x1xbf16>, vector<16x1xf32> -> vector<16x1xf32>
    %c0_15 = arith.constant 0 : index
    %c0_16 = arith.constant 0 : index
    %23 = vector.load %arg6[%c0_15, %c0_16] : memref<1x1xf32, #tpu.memory_space<vmem>>, vector<1x1xf32>
    %24 = vector.broadcast %23 : vector<1x1xf32> to vector<16x1xf32>
    %25 = arith.addf %22, %24 : vector<16x1xf32>
    %c0_17 = arith.constant 0 : index
    %c0_18 = arith.constant 0 : index
    %26 = vector.load %arg7[%c0_17, %c0_18] : memref<2x16xbf16, #tpu.memory_space<vmem>>, vector<2x16xbf16>
    %cst_19 = arith.constant 5.000000e-01 : bf16
    %27 = vector.broadcast %cst_19 : bf16 to vector<2x16xbf16>
    %28 = arith.cmpf ogt, %26, %27 : vector<2x16xbf16>
    %29 = tpu.transpose %25, [1, 0] : vector<16x1xf32> -> vector<1x16xf32>
    %cst_20 = arith.constant -1.000000e+30 : f32
    %30 = vector.shape_cast %29 : vector<1x16xf32> to vector<1x16xf32>
    %31 = vector.broadcast %30 : vector<1x16xf32> to vector<2x16xf32>
    %32 = vector.broadcast %cst_20 : f32 to vector<2x16xf32>
    %33 = arith.select %28, %31, %32 : vector<2x16xi1>, vector<2x16xf32>
    %cst_21 = arith.constant dense<0xFF800000> : vector<2xf32>
    %34 = vector.multi_reduction <maximumf>, %33, %cst_21 [1] : vector<2x16xf32> to vector<2xf32>
    %35 = vector.shape_cast %34 : vector<2xf32> to vector<2x1xf32>
    %36 = vector.broadcast %35 : vector<2x1xf32> to vector<2x16xf32>
    %37 = arith.subf %33, %36 : vector<2x16xf32>
    %38 = math.exp %37 : vector<2x16xf32>
    %cst_22 = arith.constant 0.000000e+00 : f32
    %39 = vector.broadcast %cst_22 : f32 to vector<2x16xf32>
    %40 = arith.select %28, %38, %39 : vector<2x16xi1>, vector<2x16xf32>
    %cst_23 = arith.constant dense<0.000000e+00> : vector<2xf32>
    %41 = vector.multi_reduction <add>, %40, %cst_23 [1] : vector<2x16xf32> to vector<2xf32>
    %42 = vector.shape_cast %41 : vector<2xf32> to vector<2x1xf32>
    %cst_24 = arith.constant 1.000000e-30 : f32
    %43 = vector.broadcast %cst_24 : f32 to vector<2x1xf32>
    %44 = arith.maximumf %42, %43 : vector<2x1xf32>
    %45 = vector.broadcast %44 : vector<2x1xf32> to vector<2x16xf32>
    %46 = arith.divf %40, %45 : vector<2x16xf32>
    %cst_25 = arith.constant dense<0.000000e+00> : vector<16xf32>
    %47 = vector.multi_reduction <add>, %46, %cst_25 [0] : vector<2x16xf32> to vector<16xf32>
    %48 = vector.shape_cast %47 : vector<16xf32> to vector<1x16xf32>
    %c0_26 = arith.constant 0 : index
    %c0_27 = arith.constant 0 : index
    %49 = vector.load %arg8[%c0_26, %c0_27] : memref<1x16xf32, #tpu.memory_space<vmem>>, vector<1x16xf32>
    tpu.vector_store %arg8[%c0_26, %c0_27], %48 {strides = array<i32>} : memref<1x16xf32, #tpu.memory_space<vmem>>, vector<1x16xf32>,
    return
  }
}

</mosaic_0001>

<llo_original>
// kernel: tpu_custom_call.1
$region0: #{tpu_custom_call.1}
  #allocation0 [shape = 'u32[]', space=smem, size = 0x4, offset = 0x4, fixed_abs, tag = 'smem constant byte address 0x4 - core index']
  #allocation1 [shape = 'u32[72,128]{1,0:T(1,128)}', space=vmem, size = 0x9000, scoped, tag = 'internal scratch']
  #allocation2 [shape = 'f32[1,1]{1,0:T(1,128)S(1)}', space=vmem, size = 0x200, scoped, tag = 'scoped memory for tpu_custom_call.1']
  %s0 = inlined_call_operand.vmem [shape: f32[16,8], index: 0, kind: input, shape index: {}]
  %s1 = inlined_call_operand.vmem [shape: f32[8,16], index: 1, kind: input, shape index: {}]
  %s2 = inlined_call_operand.vmem [shape: f32[1,16], index: 2, kind: input, shape index: {}]
  %s3 = inlined_call_operand.vmem [shape: f32[16,16], index: 3, kind: input, shape index: {}]
  %s4 = inlined_call_operand.vmem [shape: f32[1,16], index: 4, kind: input, shape index: {}]
  %s5 = inlined_call_operand.vmem [shape: f32[16,1], index: 5, kind: input, shape index: {}]
  %s6 = inlined_call_operand.<no memory space> [shape: f32[1,1], index: 6, kind: input, shape index: {}]
  %s7 = inlined_call_operand.vmem [shape: bf16[2,16], index: 7, kind: input, shape index: {}]
  %s8 = inlined_call_operand.hbm [shape: f32[1,16], index: 8, kind: output, shape index: {}]
  %s9 = sld [smem:[#allocation0]]
  $region42: #{tpu_custom_call.1} parent=0
    _
  %s11 = ssub.s32 1, %s9
  %s12 = scalar_select 0, %s11, %s9
  %v13 = vstv %s6
  %14 = vst [vmem:[#allocation2] sm:$0x1] %v13
  $region1: #{tpu_custom_call.1} parent=0
    #allocation3 [shape = 'u8[512]{0}', space=vmem, size = 0x400, scoped, tag = 'output window, operand 0, single buffered']
    #allocation4 [shape = 's32[1]{0}', space=sflag, size = 0x4, scoped, tag = 'scoped memory for tpu_custom_call.1']
    %15 = vsyncpa [#allocation4], 0
    // Predicated region
    $region2: #{tpu_custom_call.1} parent=1 // pred_check
      _
    $region3: #{tpu_custom_call.1} parent=1 // pred_check_branch
      %17 = sbr.rel (0) target = $region5
    $region4: #{tpu_custom_call.1} parent=1 // pred_region
      _
    $region5: #{tpu_custom_call.1} parent=1 // pred_fallthru
      _
    // Predicated region
    $region6: #{tpu_custom_call.1} parent=1 // pred_check
      _
    $region7: #{tpu_custom_call.1} parent=1 // pred_check_branch
      %19 = sbr.rel (0) target = $region9
    $region8: #{tpu_custom_call.1} parent=1 // pred_region
      _
    $region9: #{tpu_custom_call.1} parent=1 // pred_fallthru
      _
    // Predicated region
    $region10: #{tpu_custom_call.1} parent=1 // pred_check
      _
    $region11: #{tpu_custom_call.1} parent=1 // pred_check_branch
      %21 = sbr.rel (0) target = $region13
    $region12: #{tpu_custom_call.1} parent=1 // pred_region
      _
    $region13: #{tpu_custom_call.1} parent=1 // pred_fallthru
      _
    // Predicated region
    $region14: #{tpu_custom_call.1} parent=1 // pred_check
      _
    $region15: #{tpu_custom_call.1} parent=1 // pred_check_branch
      %23 = sbr.rel (0) target = $region17
    $region16: #{tpu_custom_call.1} parent=1 // pred_region
      _
    $region17: #{tpu_custom_call.1} parent=1 // pred_fallthru
      _
    // Predicated region
    $region18: #{tpu_custom_call.1} parent=1 // pred_check
      _
    $region19: #{tpu_custom_call.1} parent=1 // pred_check_branch
      %25 = sbr.rel (0) target = $region21
    $region20: #{tpu_custom_call.1} parent=1 // pred_region
      _
    $region21: #{tpu_custom_call.1} parent=1 // pred_fallthru
      _
    // Predicated region
    $region22: #{tpu_custom_call.1} parent=1 // pred_check
      _
    $region23: #{tpu_custom_call.1} parent=1 // pred_check_branch
      %27 = sbr.rel (0) target = $region25
    $region24: #{tpu_custom_call.1} parent=1 // pred_region
      _
    $region25: #{tpu_custom_call.1} parent=1 // pred_fallthru
      _
    // Predicated region
    $region26: #{tpu_custom_call.1} parent=1 // pred_check
      _
    $region27: #{tpu_custom_call.1} parent=1 // pred_check_branch
      %29 = sbr.rel (0) target = $region29
    $region28: #{tpu_custom_call.1} parent=1 // pred_region
      _
    $region29: #{tpu_custom_call.1} parent=1 // pred_fallthru
      _
    // Predicated region
    $region30: #{tpu_custom_call.1} parent=1 // pred_check
      _
    $region31: #{tpu_custom_call.1} parent=1 // pred_check_branch
      %31 = sbr.rel (0) target = $region33
    $region32: #{tpu_custom_call.1} parent=1 // pred_region
      _
    $region33: #{tpu_custom_call.1} parent=1 // pred_fallthru
      _
    %v33 = vld [vmem:[%s0] sm:$0xff]
    %v34 = vld [vmem:[%s0 + $0x8] sm:$0xff]
    %v35 = vld [vmem:[%s1] sm:$0xff]
    %v36 = vpack.c.bf16 %v34, %v33
    %v37 = vpack.c.bf16 %v35, %v35
    %v38 = vld [vmem:[%s2] sm:$0x1]
    %v40 = vperm.slane %v38, 0
    %vm42 = vcmask 64512
    %v44 = vsel %vm42, %v36, 0
    %vm46 = vcmask 1043456
    %v48 = vsel %vm46, %v37, 0
    %50 = vmatpush.bf16.msra.mxu0 0
    %51 = vmatpush.bf16.msra.mxu0 0
    %52 = vmatpush.bf16.msra.mxu0 0
    %53 = vmatpush.bf16.msra.mxu0 0
    %54 = vmatpush.bf16.msra.mxu0 0
    %55 = vmatpush.bf16.msra.mxu0 0
    %56 = vmatpush.bf16.msra.mxu0 0
    %57 = vmatpush.bf16.msra.mxu0 %v48
    %58 = vmatmul.bf16.gmra.mxu0 %v44
    %v59 = vpop.f32.mrf.mxu0
    %v60 = vadd.f32 %v40, %v59
    %v61 = vpop.f32.mrf.mxu0
    %v62 = vadd.f32 %v40, %v61
    %63 = vdwg.mxu0
    %v64 = vmax.f32 %v60, 0.0
    %v65 = vmax.f32 %v62, 0.0
    %v66 = vld [vmem:[%s3] sm:$0xff]
    %v67 = vld [vmem:[%s3 + $0x8] sm:$0xff]
    %v68 = vpack.c.bf16 %v65, %v64
    %v69 = vpack.c.bf16 %v67, %v66
    %v70 = vld [vmem:[%s4] sm:$0x1]
    %v72 = vperm.slane %v70, 0
    %vm74 = vcmask 130048
    %v76 = vsel %vm74, %v68, 0
    %78 = vmatpush.bf16.msra.mxu0 0
    %79 = vmatpush.bf16.msra.mxu0 0
    %80 = vmatpush.bf16.msra.mxu0 0
    %81 = vmatpush.bf16.msra.mxu0 0
    %82 = vmatpush.bf16.msra.mxu0 0
    %83 = vmatpush.bf16.msra.mxu0 0
    %84 = vmatpush.bf16.msra.mxu0 0
    %85 = vmatpush.bf16.msra.mxu0 %v69
    %86 = vmatmul.bf16.gmra.mxu0 %v76
    %v87 = vpop.f32.mrf.mxu0
    %v88 = vadd.f32 %v72, %v87
    %v89 = vpop.f32.mrf.mxu0
    %v90 = vadd.f32 %v72, %v89
    %91 = vdwg.mxu0
    %v92 = vmax.f32 %v88, 0.0
    %v93 = vmax.f32 %v90, 0.0
    %v94 = vld [vmem:[%s5] sm:$0xff]
    %v95 = vld [vmem:[%s5 + $0x8] sm:$0xff]
    %v96 = vpack.c.bf16 %v93, %v92
    %v97 = vpack.c.bf16 %v95, %v94
    %v98 = vld [vmem:[#allocation2] sm:$0x1]
    %v100 = vperm.slane %v98, 0
    %v103 = vsel %vm74, %v96, 0
    %105 = vmatpush.bf16.msra.mxu0 0
    %106 = vmatpush.bf16.msra.mxu0 0
    %107 = vmatpush.bf16.msra.mxu0 0
    %108 = vmatpush.bf16.msra.mxu0 0
    %109 = vmatpush.bf16.msra.mxu0 0
    %110 = vmatpush.bf16.msra.mxu0 0
    %111 = vmatpush.bf16.msra.mxu0 0
    %112 = vmatpush.bf16.msra.mxu0 %v97
    %113 = vmatmul.bf16.gmra.mxu0 %v103
    %v114 = vpop.f32.mrf.mxu0
    %v115 = vadd.f32 %v100, %v114
    %v116 = vpop.f32.mrf.mxu0
    %v117 = vadd.f32 %v100, %v116
    %118 = vdwg.mxu0
    %v119 = vld [vmem:[%s7] sm:$0x1]
    %v120 = vunpack.c.l.bf16 %v119
    %vm121 = vcmp.gt.f32.partialorder %v120, 0.5
    %122 = vxpose.xlu0.b32.start [1/16] %v115, 128
    %123 = vxpose.xlu0.b32.cont [2/16] %v117, 128
    %124 = vxpose.xlu0.b32.cont [3/16] 0.0, 128
    %125 = vxpose.xlu0.b32.cont [4/16] 0.0, 128
    %126 = vxpose.xlu0.b32.cont [5/16] 0.0, 128
    %127 = vxpose.xlu0.b32.cont [6/16] 0.0, 128
    %128 = vxpose.xlu0.b32.cont [7/16] 0.0, 128
    %129 = vxpose.xlu0.b32.cont [8/16] 0.0, 128
    %130 = vxpose.xlu0.b32.cont [9/16] 0.0, 128
    %131 = vxpose.xlu0.b32.cont [10/16] 0.0, 128
    %132 = vxpose.xlu0.b32.cont [11/16] 0.0, 128
    %133 = vxpose.xlu0.b32.cont [12/16] 0.0, 128
    %134 = vxpose.xlu0.b32.cont [13/16] 0.0, 128
    %135 = vxpose.xlu0.b32.cont [14/16] 0.0, 128
    %136 = vxpose.xlu0.b32.cont [15/16] 0.0, 128
    %137 = vxpose.xlu0.b32.end [16/16] 0.0, 128
    %v138 = vpop.trf.xlu0
    %v139 = vpop.trf.xlu0
    %v140 = vpop.trf.xlu0
    %v141 = vpop.trf.xlu0
    %v142 = vpop.trf.xlu0
    %v143 = vpop.trf.xlu0
    %v144 = vpop.trf.xlu0
    %v145 = vpop.trf.xlu0
    %v146 = vpop.trf.xlu0
    %v147 = vpop.trf.xlu0
    %v148 = vpop.trf.xlu0
    %v149 = vpop.trf.xlu0
    %v150 = vpop.trf.xlu0
    %v151 = vpop.trf.xlu0
    %v152 = vpop.trf.xlu0
    %v153 = vpop.trf.xlu0
    %v154 = vperm.slane %v138, 0
    %v155 = vsel %vm121, %v154, -1e+30
    %vm156 = vcmask 123904
    %v157 = vsel %vm156, %v155, -inf
    %158 = vmax.xlane.f32.xlu0 %v157
    %v159 = vpop.xlane.xlu0 %158
    %v160 = vsub.f32 %v155, %v159
    %v161 = vmul.f32 %v160, 1.442695
    %v162 = vpow.pop %v161
    %v163 = vsel %vm121, %v162, 0.0
    %v164 = vsel %vm156, %v163, 0.0
    %165 = vadd.xlane.f32.xlu0 %v164
    %v166 = vpop.xlane.xlu0 %165
    %v167 = vmax.f32 %v166, 1e-30
    %v168 = vrcp.pop %v167
    %v169 = vmul.f32 %v167, %v168
    %v170 = vsub.f32 1.0, %v169
    %v171 = vmul.f32 %v168, %v170
    %v172 = vadd.f32 %v168, %v171
    %vm173 = vweird.f32 %v167
    %vm174 = vweird.f32 %v168
    %vm175 = vmor %vm173, %vm174
    %v176 = vsel %vm175, %v168, %v172
    %v177 = vand.u32 2147483647, %v167
    %vm178 = vcmp.eq.f32.partialorder %v177, 8.507059e+37
    %v179 = vand.u32 %v167, 2147483648
    %v180 = vor.u32 1.1754944e-38, %v179
    %v181 = vsel %vm178, %v180, %v176
    %v182 = vmul.f32 %v163, %v181
    %v183 = vsel %vm156, %v182, 0.0
    %v184 = vrot.slane %v183, 4
    %v185 = vadd.f32 %v183, %v184
    %v186 = vrot.slane %v185, 2
    %v187 = vadd.f32 %v185, %v186
    %v188 = vrot.slane %v187, 1
    %v189 = vadd.f32 %v187, %v188
    %vm190 = vcmask 122880
    %191 = vst.msk [vmem:[#allocation3] sm:$0x1] %vm190, %v189
    // Predicated region
    $region34: #{tpu_custom_call.1} parent=1 // pred_check
      _
    $region35: #{tpu_custom_call.1} parent=1 // pred_check_branch
      %193 = sbr.rel (0) target = $region37
    $region36: #{tpu_custom_call.1} parent=1 // pred_region
      %195 = vsyncadd [#allocation4], 0
      %s197 = sshll.u32 [#allocation3], 4
      %s198 = int_to_ptr.vmem [resolvable:$true] %s197
      %s199 = sshll.u32 %s8, 4
      %s200 = int_to_ptr.hbm [resolvable:$true] %s199
      %202 = dma.vmem_to_hbm [thread:$0]  %s198, 16, %s200, [#allocation4]
    $region37: #{tpu_custom_call.1} parent=1 // pred_fallthru
      _
    // Predicated region
    $region38: #{tpu_custom_call.1} parent=1 // pred_check
      _
    $region39: #{tpu_custom_call.1} parent=1 // pred_check_branch
      %204 = sbr.rel (0) target = $region41
    $region40: #{tpu_custom_call.1} parent=1 // pred_region
      %206 = dma.done [#allocation4], 16
    $region41: #{tpu_custom_call.1} parent=1 // pred_fallthru
      _
    %207 = vsyncpa [#allocation4], 1

</llo_original>
